<compile_context>
chip_gen: v7x
topology: tpu7x:2x2x1
jax: 0.10.0
libtpu: 0.0.40
codegen_flags: <defaults>
</compile_context>

<pallas_src>
import jax
import jax.numpy as jnp
from jax.experimental import pallas as pl
from jax.experimental.pallas import tpu as pltpu


def _round_up(a, b):
    return ((a + b - 1) // b) * b


def mlp_kernel(x_ref, w0_ref, b0_ref, w1_ref, b1_ref, o_ref):
    # In-kernel cast of x to the weight dtype (bf16 fast path) — no wrapper-side astype pass.
    x = x_ref[...].astype(w0_ref.dtype)
    # ---- layer 0 (BN pre-folded into w0/b0) ----
    h = jnp.dot(x, w0_ref[...], preferred_element_type=jnp.float32) + b0_ref[...]
    h = jnp.tanh(h)
    # ---- layer 1 (BN pre-folded into w1/b1) ----
    h = jnp.dot(h.astype(w1_ref.dtype), w1_ref[...],
                preferred_element_type=jnp.float32) + b1_ref[...]
    o_ref[...] = jnp.tanh(h).astype(o_ref.dtype)


def _pick_tile_rows(n):
    """Big row tiles; split into 2 even steps only when each step keeps >= 2048 rows.

    On v5e/v6e the grid is a sequential loop, so extra steps are pure ~0.35us overhead
    at small N; on v7x the >=2048-row split lets dimension_semantics=('parallel',) shard
    rows across both TensorCores with negligible relative overhead.
    """
    cap = 8192
    n8 = _round_up(max(n, 8), 8)
    if n8 <= cap:
        if n8 >= 4096 and (n8 % 16) == 0:
            return n8 // 2        # 2 even steps of >= 2048 rows each
        return n8                 # single big block
    return cap                    # many steps of 8192 rows (tail row-padded)


def node_mlp_forward(x, params, *, tile_rows=None, use_bf16=True):
    """x: [N, D_in] float32.  params: dict with w0,b0,w1,b1 and BN scale/bias.

    use_bf16=True quantizes weights, the in-kernel activations, and the OUTPUT to bf16
    (memory-bound fast path); use_bf16=False is the exact f32 path.
    """
    N, D_in = x.shape

    # ---- fold BatchNorm (eval) into the Linear weights, once, in f32 ----
    w0f = params["bn0_scale"].reshape(-1, 1) * params["w0"]          # [D_in, H0]
    b0f = params["bn0_bias"] @ params["w0"] + params["b0"]           # [1, H0]
    w1f = params["bn1_scale"].reshape(-1, 1) * params["w1"]          # [H0, H1]
    b1f = params["bn1_bias"] @ params["w1"] + params["b1"]           # [1, H1]
    H0 = w0f.shape[1]
    H1 = w1f.shape[1]

    # ---- row tiling: big tiles, cdiv + (rare) row padding for arbitrary N ----
    if tile_rows is None:
        tile_rows = _pick_tile_rows(N)
    tile_rows = max(8, _round_up(tile_rows, 8))
    grid_rows = pl.cdiv(N, tile_rows)
    N_pad = grid_rows * tile_rows
    x_in = jnp.pad(x, ((0, N_pad - N), (0, 0))) if N_pad != N else x

    # ---- dtypes: weights (tiny) cast once in wrapper; x cast in-kernel; biases f32 ----
    w_dtype = jnp.bfloat16 if use_bf16 else jnp.float32
    out_dtype = jnp.bfloat16 if use_bf16 else jnp.float32
    w0f = w0f.astype(w_dtype)
    w1f = w1f.astype(w_dtype)
    b0f = b0f.astype(jnp.float32)
    b1f = b1f.astype(jnp.float32)

    def row_map(i):
        return (i, 0)

    def rep_map(i):
        return (0, 0)

    in_specs = [
        pl.BlockSpec((tile_rows, D_in), row_map),   # x tile (f32, cast in-kernel)
        pl.BlockSpec((D_in, H0), rep_map),          # w0 (BN-folded)
        pl.BlockSpec((1, H0), rep_map),             # b0 (BN-folded)
        pl.BlockSpec((H0, H1), rep_map),            # w1 (BN-folded, un-padded)
        pl.BlockSpec((1, H1), rep_map),             # b1 (BN-folded, un-padded)
    ]
    out_specs = pl.BlockSpec((tile_rows, H1), row_map)

    x_itemsize = x.dtype.itemsize
    w_itemsize = 2 if use_bf16 else 4
    o_itemsize = 2 if use_bf16 else 4
    cost = pl.CostEstimate(
        flops=2 * N_pad * (D_in * H0 + H0 * H1),
        transcendentals=N_pad * (H0 + H1),
        bytes_accessed=(N_pad * D_in * x_itemsize                  # x
                        + (D_in * H0 + H0 * H1) * w_itemsize       # weights
                        + (H0 + H1) * 4                            # biases
                        + N_pad * H1 * o_itemsize),                # output
    )

    out = pl.pallas_call(
        mlp_kernel,
        out_shape=jax.ShapeDtypeStruct((N_pad, H1), out_dtype),
        grid_spec=pltpu.PrefetchScalarGridSpec(
            num_scalar_prefetch=0,
            grid=(grid_rows,),
            in_specs=in_specs,
            out_specs=out_specs,
        ),
        compiler_params=pltpu.CompilerParams(
            dimension_semantics=("parallel",),
            vmem_limit_bytes=32 * 1024 * 1024,
        ),
        cost_estimate=cost,
    )(x_in, w0f, b0f, w1f, b1f)

    # Row-only slice (no lane slice anymore); no-op when N divides the tile.
    return out if N_pad == N else out[:N]


def make_params(key, d_in, layers=(16, 16), eps=1e-5):
    """Deterministic parameter init (mirrors node_mlp.__init__ shapes)."""
    ks = jax.random.split(key, 12)
    h0, h1 = layers

    # Linear 0: PyTorch stores weight as [out, in]; we pre-transpose to [in, out].
    w0 = jax.random.uniform(ks[0], (d_in, h0), jnp.float32, -0.3, 0.3)
    b0 = jax.random.uniform(ks[1], (1, h0), jnp.float32, -0.1, 0.1)
    # Linear 1
    w1 = jax.random.uniform(ks[2], (h0, h1), jnp.float32, -0.3, 0.3)
    b1 = jax.random.uniform(ks[3], (1, h1), jnp.float32, -0.1, 0.1)

    # BatchNorm1d(d_in) and BatchNorm1d(h0)  (norm_layers[2] is never used in forward).
    def bn(kg, kb, km, kv, c):
        gamma = 1.0 + 0.1 * jax.random.normal(kg, (1, c), jnp.float32)
        beta = 0.1 * jax.random.normal(kb, (1, c), jnp.float32)
        mean = 0.1 * jax.random.normal(km, (1, c), jnp.float32)
        var = jnp.abs(1.0 + 0.1 * jax.random.normal(kv, (1, c), jnp.float32))
        scale = gamma / jnp.sqrt(var + eps)
        bias = beta - mean * scale
        return scale, bias

    bn0_scale, bn0_bias = bn(ks[4], ks[5], ks[6], ks[7], d_in)
    bn1_scale, bn1_bias = bn(ks[8], ks[9], ks[10], ks[11], h0)

    return dict(w0=w0, b0=b0, w1=w1, b1=b1,
                bn0_scale=bn0_scale, bn0_bias=bn0_bias,
                bn1_scale=bn1_scale, bn1_bias=bn1_bias)


def reference_forward(x, p):
    h = x * p["bn0_scale"] + p["bn0_bias"]
    h = jnp.tanh(h @ p["w0"] + p["b0"])
    h = h * p["bn1_scale"] + p["bn1_bias"]
    h = jnp.tanh(h @ p["w1"] + p["b1"])
    return h


if __name__ == "__main__":
    key = jax.random.PRNGKey(0)
    k_x, k_p = jax.random.split(key)

    N, D_IN = 64, 32          # batch=64, input feature dim=32, layers=[16, 16]
    x = jax.random.normal(k_x, (N, D_IN), jnp.float32)
    params = make_params(k_p, D_IN, layers=(16, 16))

    ref = reference_forward(x, params)

    # f32 path (exact up to BN-fold rounding)
    out_f32 = jax.block_until_ready(node_mlp_forward(x, params, use_bf16=False))
    assert out_f32.shape == (N, 16)
    assert out_f32.dtype == jnp.float32
    assert jnp.allclose(out_f32, ref, atol=1e-4, rtol=1e-4), "f32 mismatch vs reference"

    # bf16 path (memory-bound fast path: bf16 weights/activations/output, f32 accumulate)
    out_bf16 = jax.block_until_ready(node_mlp_forward(x, params, use_bf16=True))
    assert out_bf16.shape == (N, 16)
    assert jnp.allclose(out_bf16.astype(jnp.float32), ref, atol=5e-2, rtol=5e-2), \
        "bf16 mismatch vs reference"

    print("KERNEL_OK")
</pallas_src>

<mosaic_0001>
module attributes {stable_mosaic.version = 11 : i64} {
  func.func @mlp_kernel(%arg0: i32, %arg1: memref<64x32xf32, #tpu.memory_space<vmem>>, %arg2: memref<32x16xf32, #tpu.memory_space<vmem>>, %arg3: memref<1x16xf32, #tpu.memory_space<vmem>>, %arg4: memref<16x16xf32, #tpu.memory_space<vmem>>, %arg5: memref<1x16xf32, #tpu.memory_space<vmem>>, %arg6: memref<64x16xf32, #tpu.memory_space<vmem>>) attributes {dimension_semantics = [#tpu.dimension_semantics<parallel>], iteration_bounds = array<i64: 1>, scalar_prefetch = 0 : i64, scratch_operands = 0 : i64, tpu.core_type = #tpu.core_type<tc>, window_params = [{transform_indices = @transform_0, window_bounds = array<i64: 64, 32>}, {pipeline_mode = #tpu.pipeline_mode<synchronous>, transform_indices = @transform_1, window_bounds = array<i64: 32, 16>}, {pipeline_mode = #tpu.pipeline_mode<synchronous>, transform_indices = @transform_2, window_bounds = array<i64: 1, 16>}, {pipeline_mode = #tpu.pipeline_mode<synchronous>, transform_indices = @transform_3, window_bounds = array<i64: 16, 16>}, {pipeline_mode = #tpu.pipeline_mode<synchronous>, transform_indices = @transform_4, window_bounds = array<i64: 1, 16>}, {transform_indices = @transform_5, window_bounds = array<i64: 64, 16>}]} {
    %c0 = arith.constant 0 : index
    %c0_0 = arith.constant 0 : index
    %0 = vector.load %arg1[%c0, %c0_0] : memref<64x32xf32, #tpu.memory_space<vmem>>, vector<64x32xf32>
    %c0_1 = arith.constant 0 : index
    %c0_2 = arith.constant 0 : index
    %1 = vector.load %arg2[%c0_1, %c0_2] : memref<32x16xf32, #tpu.memory_space<vmem>>, vector<32x16xf32>
    %cst = arith.constant dense<0.000000e+00> : vector<64x16xf32>
    %2 = tpu.matmul %0, %1, %cst {dimension_numbers = #tpu.dot_dimension_numbers<[1], [0], [0], [1], [0, 0, 1, 1], [], []>} : vector<64x32xf32>, vector<32x16xf32>, vector<64x16xf32> -> vector<64x16xf32>
    %c0_3 = arith.constant 0 : index
    %c0_4 = arith.constant 0 : index
    %3 = vector.load %arg3[%c0_3, %c0_4] : memref<1x16xf32, #tpu.memory_space<vmem>>, vector<1x16xf32>
    %4 = vector.broadcast %3 : vector<1x16xf32> to vector<64x16xf32>
    %5 = arith.addf %2, %4 : vector<64x16xf32>
    %6 = math.tanh %5 : vector<64x16xf32>
    %c0_5 = arith.constant 0 : index
    %c0_6 = arith.constant 0 : index
    %7 = vector.load %arg4[%c0_5, %c0_6] : memref<16x16xf32, #tpu.memory_space<vmem>>, vector<16x16xf32>
    %cst_7 = arith.constant dense<0.000000e+00> : vector<64x16xf32>
    %8 = tpu.matmul %6, %7, %cst_7 {dimension_numbers = #tpu.dot_dimension_numbers<[1], [0], [0], [1], [0, 0, 1, 1], [], []>} : vector<64x16xf32>, vector<16x16xf32>, vector<64x16xf32> -> vector<64x16xf32>
    %c0_8 = arith.constant 0 : index
    %c0_9 = arith.constant 0 : index
    %9 = vector.load %arg5[%c0_8, %c0_9] : memref<1x16xf32, #tpu.memory_space<vmem>>, vector<1x16xf32>
    %10 = vector.broadcast %9 : vector<1x16xf32> to vector<64x16xf32>
    %11 = arith.addf %8, %10 : vector<64x16xf32>
    %12 = math.tanh %11 : vector<64x16xf32>
    %c0_10 = arith.constant 0 : index
    %c0_11 = arith.constant 0 : index
    %13 = vector.load %arg6[%c0_10, %c0_11] : memref<64x16xf32, #tpu.memory_space<vmem>>, vector<64x16xf32>
    tpu.vector_store %arg6[%c0_10, %c0_11], %12 {strides = array<i32>} : memref<64x16xf32, #tpu.memory_space<vmem>>, vector<64x16xf32>,
    return
  }
  func.func @transform_0(%arg0: i32) -> (i32, i32) {
    %c0_i32 = arith.constant 0 : i32
    %c0_i32_0 = arith.constant 0 : i32
    return %arg0, %c0_i32 : i32, i32
  }
  func.func @transform_1(%arg0: i32) -> (i32, i32) {
    %c0_i32 = arith.constant 0 : i32
    %c0_i32_0 = arith.constant 0 : i32
    %c0_i32_1 = arith.constant 0 : i32
    return %c0_i32, %c0_i32_0 : i32, i32
  }
  func.func @transform_2(%arg0: i32) -> (i32, i32) {
    %c0_i32 = arith.constant 0 : i32
    %c0_i32_0 = arith.constant 0 : i32
    %c0_i32_1 = arith.constant 0 : i32
    return %c0_i32, %c0_i32_0 : i32, i32
  }
  func.func @transform_3(%arg0: i32) -> (i32, i32) {
    %c0_i32 = arith.constant 0 : i32
    %c0_i32_0 = arith.constant 0 : i32
    %c0_i32_1 = arith.constant 0 : i32
    return %c0_i32, %c0_i32_0 : i32, i32
  }
  func.func @transform_4(%arg0: i32) -> (i32, i32) {
    %c0_i32 = arith.constant 0 : i32
    %c0_i32_0 = arith.constant 0 : i32
    %c0_i32_1 = arith.constant 0 : i32
    return %c0_i32, %c0_i32_0 : i32, i32
  }
  func.func @transform_5(%arg0: i32) -> (i32, i32) {
    %c0_i32 = arith.constant 0 : i32
    %c0_i32_0 = arith.constant 0 : i32
    return %arg0, %c0_i32 : i32, i32
  }
}

</mosaic_0001>

<llo_original>
// kernel: tpu_custom_call.1
$region0: #{tpu_custom_call.1}
  #allocation0 [shape = 'u32[]', space=smem, size = 0x4, offset = 0x4, fixed_abs, tag = 'smem constant byte address 0x4 - core index']
  #allocation1 [shape = 'u32[144,128]{1,0:T(1,128)}', space=vmem, size = 0x12000, scoped, tag = 'internal scratch']
  %s0 = inlined_call_operand.vmem [shape: f32[64,32], index: 0, kind: input, shape index: {}]
  %s1 = inlined_call_operand.vmem [shape: f32[32,16], index: 1, kind: input, shape index: {}]
  %s2 = inlined_call_operand.vmem [shape: f32[1,16], index: 2, kind: input, shape index: {}]
  %s3 = inlined_call_operand.vmem [shape: f32[16,16], index: 3, kind: input, shape index: {}]
  %s4 = inlined_call_operand.vmem [shape: f32[1,16], index: 4, kind: input, shape index: {}]
  %s5 = inlined_call_operand.vmem [shape: f32[64,16], index: 5, kind: output, shape index: {}]
  %s6 = sld [smem:[#allocation0]]
  $region30: #{tpu_custom_call.1} parent=0
    _
  %s8 = ssub.s32 1, %s6
  %s9 = scalar_select 0, %s8, %s6
  // Predicated region
  $region2: #{tpu_custom_call.1} parent=0 // pred_check
    _
  $region3: #{tpu_custom_call.1} parent=0 // pred_check_branch
    %11 = sbr.rel (0) target = $region5
  $region4: #{tpu_custom_call.1} parent=0 // pred_region
    _
  $region5: #{tpu_custom_call.1} parent=0 // pred_fallthru
    _
  // Predicated region
  $region6: #{tpu_custom_call.1} parent=0 // pred_check
    _
  $region7: #{tpu_custom_call.1} parent=0 // pred_check_branch
    %13 = sbr.rel (0) target = $region9
  $region8: #{tpu_custom_call.1} parent=0 // pred_region
    _
  $region9: #{tpu_custom_call.1} parent=0 // pred_fallthru
    _
  // Predicated region
  $region10: #{tpu_custom_call.1} parent=0 // pred_check
    _
  $region11: #{tpu_custom_call.1} parent=0 // pred_check_branch
    %15 = sbr.rel (0) target = $region13
  $region12: #{tpu_custom_call.1} parent=0 // pred_region
    _
  $region13: #{tpu_custom_call.1} parent=0 // pred_fallthru
    _
  // Predicated region
  $region14: #{tpu_custom_call.1} parent=0 // pred_check
    _
  $region15: #{tpu_custom_call.1} parent=0 // pred_check_branch
    %17 = sbr.rel (0) target = $region17
  $region16: #{tpu_custom_call.1} parent=0 // pred_region
    _
  $region17: #{tpu_custom_call.1} parent=0 // pred_fallthru
    _
  // Predicated region
  $region18: #{tpu_custom_call.1} parent=0 // pred_check
    _
  $region19: #{tpu_custom_call.1} parent=0 // pred_check_branch
    %19 = sbr.rel (0) target = $region21
  $region20: #{tpu_custom_call.1} parent=0 // pred_region
    _
  $region21: #{tpu_custom_call.1} parent=0 // pred_fallthru
    _
  %v20 = vld [vmem:[%s0] sm:$0xff]
  %v21 = vld [vmem:[%s0 + $0x8] sm:$0xff]
  %v22 = vld [vmem:[%s0 + $0x10] sm:$0xff]
  %v23 = vld [vmem:[%s0 + $0x18] sm:$0xff]
  %v24 = vld [vmem:[%s0 + $0x20] sm:$0xff]
  %v25 = vld [vmem:[%s0 + $0x28] sm:$0xff]
  %v26 = vld [vmem:[%s0 + $0x30] sm:$0xff]
  %v27 = vld [vmem:[%s0 + $0x38] sm:$0xff]
  %v28 = vld [vmem:[%s1] sm:$0xff]
  %v29 = vld [vmem:[%s1 + $0x8] sm:$0xff]
  %v30 = vld [vmem:[%s1 + $0x10] sm:$0xff]
  %v31 = vld [vmem:[%s1 + $0x18] sm:$0xff]
  %v32 = vld [vmem:[%s2] sm:$0x1]
  %v34 = vlaneseq
  %v35 = vshrl.u32 %v34, 7
  %v36 = vsub.s32 0, %v35
  %v37 = vrot.slane %v32, %v36
  %vm39 = vcmask 261120
  %v41 = vsel %vm39, %v20, 0
  %v44 = vsel %vm39, %v21, 0
  %v47 = vsel %vm39, %v22, 0
  %v50 = vsel %vm39, %v23, 0
  %v53 = vsel %vm39, %v24, 0
  %v56 = vsel %vm39, %v25, 0
  %v59 = vsel %vm39, %v26, 0
  %v62 = vsel %vm39, %v27, 0
  %64 = vmatprep.subr.mxu0 0.0
  %65 = vmatpush1.msra.mxu0 %v28
  %66 = vmatprep.subr.mxu0 0.0
  %67 = vmatpush1.msra.mxu0 %v29
  %68 = vmatprep.subr.mxu0 0.0
  %69 = vmatpush1.msra.mxu0 %v30
  %70 = vmatprep.subr.mxu0 0.0
  %71 = vmatpush1.msra.mxu0 %v31
  %72 = vmatprep.subr.mxu0 0.0
  %73 = vmatpush1.msra.mxu0 0.0
  %74 = vmatprep.subr.mxu0 0.0
  %75 = vmatpush1.msra.mxu0 0.0
  %76 = vmatprep.subr.mxu0 0.0
  %77 = vmatpush1.msra.mxu0 0.0
  %78 = vmatprep.subr.mxu0 0.0
  %79 = vmatpush1.msra.mxu0 0.0
  %80 = vmatprep.subr.mxu0 0.0
  %81 = vmatpush1.msra.mxu0 0.0
  %82 = vmatprep.subr.mxu0 0.0
  %83 = vmatpush1.msra.mxu0 0.0
  %84 = vmatprep.subr.mxu0 0.0
  %85 = vmatpush1.msra.mxu0 0.0
  %86 = vmatprep.subr.mxu0 0.0
  %87 = vmatpush1.msra.mxu0 0.0
  %88 = vmatprep.subr.mxu0 0.0
  %89 = vmatpush1.msra.mxu0 0.0
  %90 = vmatprep.subr.mxu0 0.0
  %91 = vmatpush1.msra.mxu0 0.0
  %92 = vmatprep.subr.mxu0 0.0
  %93 = vmatpush1.msra.mxu0 0.0
  %94 = vmatprep.subr.mxu0 0.0
  %95 = vmatpush1.msra.mxu0 0.0
  %96 = vmatprep.subr.mxu0 0.0
  %97 = vmatpush1.msra.mxu0 0.0
  %98 = vmatprep.subr.mxu0 0.0
  %99 = vmatpush1.msra.mxu0 0.0
  %100 = vmatprep.subr.mxu0 0.0
  %101 = vmatpush1.msra.mxu0 0.0
  %102 = vmatprep.subr.mxu0 0.0
  %103 = vmatpush1.msra.mxu0 0.0
  %104 = vmatprep.subr.mxu0 0.0
  %105 = vmatpush1.msra.mxu0 0.0
  %106 = vmatprep.subr.mxu0 0.0
  %107 = vmatpush1.msra.mxu0 0.0
  %108 = vmatprep.subr.mxu0 0.0
  %109 = vmatpush1.msra.mxu0 0.0
  %110 = vmatprep.subr.mxu0 0.0
  %111 = vmatpush1.msra.mxu0 0.0
  %112 = vmatprep.subr.mxu0 0.0
  %113 = vmatpush1.msra.mxu0 0.0
  %114 = vmatprep.subr.mxu0 0.0
  %115 = vmatpush1.msra.mxu0 0.0
  %116 = vmatprep.subr.mxu0 0.0
  %117 = vmatpush1.msra.mxu0 0.0
  %118 = vmatprep.subr.mxu0 0.0
  %119 = vmatpush1.msra.mxu0 0.0
  %120 = vmatprep.subr.mxu0 0.0
  %121 = vmatpush1.msra.mxu0 0.0
  %122 = vmatprep.subr.mxu0 0.0
  %123 = vmatpush1.msra.mxu0 0.0
  %124 = vmatprep.subr.mxu0 0.0
  %125 = vmatpush1.msra.mxu0 0.0
  %126 = vmatprep.subr.mxu0 0.0
  %127 = vmatpush1.msra.mxu0 0.0
  %128 = vmatprep.mubr.f32.mxu0 0.0
  %129 = vmatmul.mubr.f32.gmra.mrb[0].mxu0 %v41
  %v130 = vpop.f32.mrb[0].mxu0
  %v131 = vadd.f32 %v37, %v130
  %v132 = vpop.f32.mrb[0].mxu0
  %133 = vmatprep.mubr.f32.mxu0 0.0
  %134 = vmatmul.mubr.f32.gmra.mrb[0].mxu0 %v44
  %v135 = vpop.f32.mrb[0].mxu0
  %v136 = vadd.f32 %v37, %v135
  %v137 = vpop.f32.mrb[0].mxu0
  %138 = vmatprep.mubr.f32.mxu0 0.0
  %139 = vmatmul.mubr.f32.gmra.mrb[0].mxu0 %v47
  %v140 = vpop.f32.mrb[0].mxu0
  %v141 = vadd.f32 %v37, %v140
  %v142 = vpop.f32.mrb[0].mxu0
  %143 = vmatprep.mubr.f32.mxu0 0.0
  %144 = vmatmul.mubr.f32.gmra.mrb[0].mxu0 %v50
  %v145 = vpop.f32.mrb[0].mxu0
  %v146 = vadd.f32 %v37, %v145
  %v147 = vpop.f32.mrb[0].mxu0
  %148 = vmatprep.mubr.f32.mxu0 0.0
  %149 = vmatmul.mubr.f32.gmra.mrb[0].mxu0 %v53
  %v150 = vpop.f32.mrb[0].mxu0
  %v151 = vadd.f32 %v37, %v150
  %v152 = vpop.f32.mrb[0].mxu0
  %153 = vmatprep.mubr.f32.mxu0 0.0
  %154 = vmatmul.mubr.f32.gmra.mrb[0].mxu0 %v56
  %v155 = vpop.f32.mrb[0].mxu0
  %v156 = vadd.f32 %v37, %v155
  %v157 = vpop.f32.mrb[0].mxu0
  %158 = vmatprep.mubr.f32.mxu0 0.0
  %159 = vmatmul.mubr.f32.gmra.mrb[0].mxu0 %v59
  %v160 = vpop.f32.mrb[0].mxu0
  %v161 = vadd.f32 %v37, %v160
  %v162 = vpop.f32.mrb[0].mxu0
  %163 = vmatprep.mubr.f32.mxu0 0.0
  %164 = vmatmul.mubr.f32.gmra.mrb[0].mxu0 %v62
  %v165 = vpop.f32.mrb[0].mxu0
  %v166 = vadd.f32 %v37, %v165
  %v167 = vpop.f32.mrb[0].mxu0
  %168 = vdwg.mxu0
  %v169 = vtanh.pop %v131
  %v170 = vtanh.pop %v136
  %v171 = vtanh.pop %v141
  %v172 = vtanh.pop %v146
  %v173 = vtanh.pop %v151
  %v174 = vtanh.pop %v156
  %v175 = vtanh.pop %v161
  %v176 = vtanh.pop %v166
  %v177 = vld [vmem:[%s3] sm:$0xff]
  %v178 = vld [vmem:[%s3 + $0x8] sm:$0xff]
  %v179 = vld [vmem:[%s4] sm:$0x1]
  %v181 = vlaneseq
  %v182 = vshrl.u32 %v181, 7
  %v183 = vsub.s32 0, %v182
  %v184 = vrot.slane %v179, %v183
  %vm186 = vcmask 130048
  %v188 = vsel %vm186, %v169, 0
  %v191 = vsel %vm186, %v170, 0
  %v194 = vsel %vm186, %v171, 0
  %v197 = vsel %vm186, %v172, 0
  %v200 = vsel %vm186, %v173, 0
  %v203 = vsel %vm186, %v174, 0
  %v206 = vsel %vm186, %v175, 0
  %v209 = vsel %vm186, %v176, 0
  %211 = vmatprep.subr.mxu0 0.0
  %212 = vmatpush1.msra.mxu0 %v177
  %213 = vmatprep.subr.mxu0 0.0
  %214 = vmatpush1.msra.mxu0 %v178
  %215 = vmatprep.subr.mxu0 0.0
  %216 = vmatpush1.msra.mxu0 0.0
  %217 = vmatprep.subr.mxu0 0.0
  %218 = vmatpush1.msra.mxu0 0.0
  %219 = vmatprep.subr.mxu0 0.0
  %220 = vmatpush1.msra.mxu0 0.0
  %221 = vmatprep.subr.mxu0 0.0
  %222 = vmatpush1.msra.mxu0 0.0
  %223 = vmatprep.subr.mxu0 0.0
  %224 = vmatpush1.msra.mxu0 0.0
  %225 = vmatprep.subr.mxu0 0.0
  %226 = vmatpush1.msra.mxu0 0.0
  %227 = vmatprep.subr.mxu0 0.0
  %228 = vmatpush1.msra.mxu0 0.0
  %229 = vmatprep.subr.mxu0 0.0
  %230 = vmatpush1.msra.mxu0 0.0
  %231 = vmatprep.subr.mxu0 0.0
  %232 = vmatpush1.msra.mxu0 0.0
  %233 = vmatprep.subr.mxu0 0.0
  %234 = vmatpush1.msra.mxu0 0.0
  %235 = vmatprep.subr.mxu0 0.0
  %236 = vmatpush1.msra.mxu0 0.0
  %237 = vmatprep.subr.mxu0 0.0
  %238 = vmatpush1.msra.mxu0 0.0
  %239 = vmatprep.subr.mxu0 0.0
  %240 = vmatpush1.msra.mxu0 0.0
  %241 = vmatprep.subr.mxu0 0.0
  %242 = vmatpush1.msra.mxu0 0.0
  %243 = vmatprep.subr.mxu0 0.0
  %244 = vmatpush1.msra.mxu0 0.0
  %245 = vmatprep.subr.mxu0 0.0
  %246 = vmatpush1.msra.mxu0 0.0
  %247 = vmatprep.subr.mxu0 0.0
  %248 = vmatpush1.msra.mxu0 0.0
  %249 = vmatprep.subr.mxu0 0.0
  %250 = vmatpush1.msra.mxu0 0.0
  %251 = vmatprep.subr.mxu0 0.0
  %252 = vmatpush1.msra.mxu0 0.0
  %253 = vmatprep.subr.mxu0 0.0
  %254 = vmatpush1.msra.mxu0 0.0
  %255 = vmatprep.subr.mxu0 0.0
  %256 = vmatpush1.msra.mxu0 0.0
  %257 = vmatprep.subr.mxu0 0.0
  %258 = vmatpush1.msra.mxu0 0.0
  %259 = vmatprep.subr.mxu0 0.0
  %260 = vmatpush1.msra.mxu0 0.0
  %261 = vmatprep.subr.mxu0 0.0
  %262 = vmatpush1.msra.mxu0 0.0
  %263 = vmatprep.subr.mxu0 0.0
  %264 = vmatpush1.msra.mxu0 0.0
  %265 = vmatprep.subr.mxu0 0.0
  %266 = vmatpush1.msra.mxu0 0.0
  %267 = vmatprep.subr.mxu0 0.0
  %268 = vmatpush1.msra.mxu0 0.0
  %269 = vmatprep.subr.mxu0 0.0
  %270 = vmatpush1.msra.mxu0 0.0
  %271 = vmatprep.subr.mxu0 0.0
  %272 = vmatpush1.msra.mxu0 0.0
  %273 = vmatprep.subr.mxu0 0.0
  %274 = vmatpush1.msra.mxu0 0.0
  %275 = vmatprep.mubr.f32.mxu0 0.0
  %276 = vmatmul.mubr.f32.gmra.mrb[0].mxu0 %v188
  %v277 = vpop.f32.mrb[0].mxu0
  %v278 = vadd.f32 %v184, %v277
  %v279 = vpop.f32.mrb[0].mxu0
  %280 = vmatprep.mubr.f32.mxu0 0.0
  %281 = vmatmul.mubr.f32.gmra.mrb[0].mxu0 %v191
  %v282 = vpop.f32.mrb[0].mxu0
  %v283 = vadd.f32 %v184, %v282
  %v284 = vpop.f32.mrb[0].mxu0
  %285 = vmatprep.mubr.f32.mxu0 0.0
  %286 = vmatmul.mubr.f32.gmra.mrb[0].mxu0 %v194
  %v287 = vpop.f32.mrb[0].mxu0
  %v288 = vadd.f32 %v184, %v287
  %v289 = vpop.f32.mrb[0].mxu0
  %290 = vmatprep.mubr.f32.mxu0 0.0
  %291 = vmatmul.mubr.f32.gmra.mrb[0].mxu0 %v197
  %v292 = vpop.f32.mrb[0].mxu0
  %v293 = vadd.f32 %v184, %v292
  %v294 = vpop.f32.mrb[0].mxu0
  %295 = vmatprep.mubr.f32.mxu0 0.0
  %296 = vmatmul.mubr.f32.gmra.mrb[0].mxu0 %v200
  %v297 = vpop.f32.mrb[0].mxu0
  %v298 = vadd.f32 %v184, %v297
  %v299 = vpop.f32.mrb[0].mxu0
  %300 = vmatprep.mubr.f32.mxu0 0.0
  %301 = vmatmul.mubr.f32.gmra.mrb[0].mxu0 %v203
  %v302 = vpop.f32.mrb[0].mxu0
  %v303 = vadd.f32 %v184, %v302
  %v304 = vpop.f32.mrb[0].mxu0
  %305 = vmatprep.mubr.f32.mxu0 0.0
  %306 = vmatmul.mubr.f32.gmra.mrb[0].mxu0 %v206
  %v307 = vpop.f32.mrb[0].mxu0
  %v308 = vadd.f32 %v184, %v307
  %v309 = vpop.f32.mrb[0].mxu0
  %310 = vmatprep.mubr.f32.mxu0 0.0
  %311 = vmatmul.mubr.f32.gmra.mrb[0].mxu0 %v209
  %v312 = vpop.f32.mrb[0].mxu0
  %v313 = vadd.f32 %v184, %v312
  %v314 = vpop.f32.mrb[0].mxu0
  %315 = vdwg.mxu0
  %v316 = vtanh.pop %v278
  %v317 = vtanh.pop %v283
  %v318 = vtanh.pop %v288
  %v319 = vtanh.pop %v293
  %v320 = vtanh.pop %v298
  %v321 = vtanh.pop %v303
  %v322 = vtanh.pop %v308
  %v323 = vtanh.pop %v313
  %324 = vst.msk [vmem:[%s5] sm:$0xff] %vm186, %v316
  %325 = vst.msk [vmem:[%s5 + $0x8] sm:$0xff] %vm186, %v317
  %326 = vst.msk [vmem:[%s5 + $0x10] sm:$0xff] %vm186, %v318
  %327 = vst.msk [vmem:[%s5 + $0x18] sm:$0xff] %vm186, %v319
  %328 = vst.msk [vmem:[%s5 + $0x20] sm:$0xff] %vm186, %v320
  %329 = vst.msk [vmem:[%s5 + $0x28] sm:$0xff] %vm186, %v321
  %330 = vst.msk [vmem:[%s5 + $0x30] sm:$0xff] %vm186, %v322
  %331 = vst.msk [vmem:[%s5 + $0x38] sm:$0xff] %vm186, %v323
  // Predicated region
  $region22: #{tpu_custom_call.1} parent=0 // pred_check
    _
  $region23: #{tpu_custom_call.1} parent=0 // pred_check_branch
    %333 = sbr.rel (0) target = $region25
  $region24: #{tpu_custom_call.1} parent=0 // pred_region
    _
  $region25: #{tpu_custom_call.1} parent=0 // pred_fallthru
    _
  // Predicated region
  $region26: #{tpu_custom_call.1} parent=0 // pred_check
    _
  $region27: #{tpu_custom_call.1} parent=0 // pred_check_branch
    %335 = sbr.rel (0) target = $region29
  $region28: #{tpu_custom_call.1} parent=0 // pred_region
    _
  $region29: #{tpu_custom_call.1} parent=0 // pred_fallthru
    _

</llo_original>
